<compile_context>
chip_gen: v7x
topology: tpu7x:2x2x1
jax: 0.10.0
libtpu: 0.0.40
codegen_flags: <defaults>
</compile_context>

<pallas_src>
import functools

import jax
import jax.numpy as jnp
from jax import lax
from jax.experimental import pallas as pl
from jax.experimental.pallas import tpu as pltpu

BN_EPS = 1e-5


def _round_up(x, m):
    return (x + m - 1) // m * m


# --------------------------------------------------------------------------
# Pass 1: y = x @ W (MXU), plus per-feature sum(y) / sum(y^2) accumulation.
# --------------------------------------------------------------------------
def _matmul_stats_kernel(x_ref, w_ref, y_ref, sum_ref, sq_ref):
    # x_ref:   (tile_n, IN_pad)    compute dtype (f32 or bf16)
    # w_ref:   (IN_pad, tile_out)  compute dtype (resident across N tiles)
    # y_ref:   (tile_n, tile_out)  f32
    # sum_ref: (1, tile_out)       f32, resident accumulator across N tiles
    # sq_ref:  (1, tile_out)       f32, resident accumulator across N tiles
    i_n = pl.program_id(1)

    y = jnp.dot(x_ref[...], w_ref[...], preferred_element_type=jnp.float32)
    y_ref[...] = y

    @pl.when(i_n == 0)
    def _():
        sum_ref[...] = jnp.zeros_like(sum_ref)
        sq_ref[...] = jnp.zeros_like(sq_ref)

    # Cross-sublane reductions go to the XLU and overlap the MXU work.
    sum_ref[...] += jnp.sum(y, axis=0, keepdims=True)
    sq_ref[...] += jnp.sum(y * y, axis=0, keepdims=True)


# --------------------------------------------------------------------------
# Pass 2: folded BN affine + ReLU, written in place over y (aliased output).
# --------------------------------------------------------------------------
def _bn_relu_kernel(y_ref, sum_ref, sq_ref, gamma_ref, beta_ref, o_ref, *, inv_n):
    mean = sum_ref[...] * inv_n                                   # (1, tile_out)
    var = jnp.maximum(sq_ref[...] * inv_n - mean * mean, 0.0)     # biased var, f32
    scale = gamma_ref[...] * lax.rsqrt(var + BN_EPS)              # EUP rsqrt
    shift = beta_ref[...] - mean * scale
    # One FMA + max over the (tile_n, tile_out) tile.
    o_ref[...] = jnp.maximum(y_ref[...] * scale + shift, 0.0).astype(o_ref.dtype)


# --------------------------------------------------------------------------
# Wrapper
# --------------------------------------------------------------------------
def dense_block_forward(x, weight, bias, gamma, beta, *,
                        compute_dtype=jnp.float32,
                        tile_n_max=256, tile_out_max=256):
    """x: (B, T, IN) or (B, IN). weight: (OUT, IN). bias/gamma/beta: (OUT,)."""
    # The Linear bias is a per-feature constant, which training-mode BN's
    # mean-subtraction cancels exactly -> drop it (saves a VPU pass + a DMA).
    del bias

    orig_shape = x.shape
    in_dim = orig_shape[-1]
    out_dim = weight.shape[0]

    x_flat = x.reshape(-1, in_dim)
    n = x_flat.shape[0]

    # Lane-dense padding: last dims -> multiples of 128; N -> multiple of tile_n.
    in_pad = _round_up(in_dim, 128)
    out_pad = _round_up(out_dim, 128)
    tile_n = min(tile_n_max, _round_up(n, 8))
    n_pad = _round_up(n, tile_n)
    tile_out = tile_out_max if out_pad % tile_out_max == 0 else 128

    n_tiles_n = n_pad // tile_n
    n_tiles_out = out_pad // tile_out

    # Zero padding: padded x rows give y == 0 exactly (no bias), so the
    # statistics divided by the true N stay correct; padded OUT columns are
    # sliced off at the end.
    x_p = jnp.zeros((n_pad, in_pad), compute_dtype).at[:n, :in_dim].set(
        x_flat.astype(compute_dtype))
    w_p = jnp.zeros((in_pad, out_pad), compute_dtype).at[:in_dim, :out_dim].set(
        weight.T.astype(compute_dtype))
    g_p = jnp.ones((1, out_pad), jnp.float32).at[0, :out_dim].set(
        gamma.astype(jnp.float32))
    b_p = jnp.zeros((1, out_pad), jnp.float32).at[0, :out_dim].set(
        beta.astype(jnp.float32))

    vmem_limit = 32 * 1024 * 1024  # explicit, safe on v5e/v6e/v7x

    # ---- pass 1: matmul + stats -------------------------------------------
    y_pad, ssum, ssq = pl.pallas_call(
        _matmul_stats_kernel,
        out_shape=(
            jax.ShapeDtypeStruct((n_pad, out_pad), jnp.float32),
            jax.ShapeDtypeStruct((1, out_pad), jnp.float32),
            jax.ShapeDtypeStruct((1, out_pad), jnp.float32),
        ),
        grid=(n_tiles_out, n_tiles_n),
        in_specs=[
            pl.BlockSpec((tile_n, in_pad), lambda o, i: (i, 0)),     # x: stream N
            pl.BlockSpec((in_pad, tile_out), lambda o, i: (0, o)),   # W: resident
        ],
        out_specs=(
            pl.BlockSpec((tile_n, tile_out), lambda o, i: (i, o)),   # y tiles
            pl.BlockSpec((1, tile_out), lambda o, i: (0, o)),        # sum acc
            pl.BlockSpec((1, tile_out), lambda o, i: (0, o)),        # sumsq acc
        ),
        compiler_params=pltpu.CompilerParams(
            dimension_semantics=("parallel", "arbitrary"),
            vmem_limit_bytes=vmem_limit),
        cost_estimate=pl.CostEstimate(
            flops=2 * n_pad * in_pad * out_pad + 3 * n_pad * out_pad,
            transcendentals=0,
            bytes_accessed=4 * (n_pad * in_pad + in_pad * out_pad
                                + n_pad * out_pad + 2 * out_pad)),
    )(x_p, w_p)

    # ---- pass 2: folded BN + ReLU, in place over y --------------------------
    out_pad_arr = pl.pallas_call(
        functools.partial(_bn_relu_kernel, inv_n=1.0 / n),
        out_shape=jax.ShapeDtypeStruct((n_pad, out_pad), jnp.float32),
        grid=(n_tiles_out, n_tiles_n),
        in_specs=[
            pl.BlockSpec((tile_n, tile_out), lambda o, i: (i, o)),   # y (aliased)
            pl.BlockSpec((1, tile_out), lambda o, i: (0, o)),        # sum
            pl.BlockSpec((1, tile_out), lambda o, i: (0, o)),        # sumsq
            pl.BlockSpec((1, tile_out), lambda o, i: (0, o)),        # gamma
            pl.BlockSpec((1, tile_out), lambda o, i: (0, o)),        # beta
        ],
        out_specs=pl.BlockSpec((tile_n, tile_out), lambda o, i: (i, o)),
        input_output_aliases={0: 0},   # overwrite y in place, no extra HBM buffer
        compiler_params=pltpu.CompilerParams(
            dimension_semantics=("parallel", "parallel"),
            vmem_limit_bytes=vmem_limit),
    )(y_pad, ssum, ssq, g_p, b_p)

    out = out_pad_arr[:n, :out_dim]
    return out.reshape(orig_shape[:-1] + (out_dim,)).astype(x.dtype)


# --------------------------------------------------------------------------
# Plain-JAX reference mirroring PyTorch training-mode forward (bias included).
# --------------------------------------------------------------------------
def dense_block_reference(x, weight, bias, gamma, beta):
    y = jnp.einsum("...i,oi->...o", x.astype(jnp.float32),
                   weight.astype(jnp.float32)) + bias
    y2 = y.reshape(-1, y.shape[-1])
    mean = jnp.mean(y2, axis=0)
    var = jnp.mean((y2 - mean) ** 2, axis=0)
    y_hat = (y - mean) / jnp.sqrt(var + BN_EPS)
    return jnp.maximum(y_hat * gamma + beta, 0.0)


if __name__ == "__main__":
    B, T, IN, OUT = 2, 8, 32, 64

    key = jax.random.PRNGKey(0)
    kx, kw, kb, kg, kbe = jax.random.split(key, 5)

    x = jax.random.normal(kx, (B, T, IN), dtype=jnp.float32)

    bound = 1.0 / (IN ** 0.5)
    weight = jax.random.uniform(kw, (OUT, IN), minval=-bound, maxval=bound,
                                dtype=jnp.float32)
    bias = jax.random.uniform(kb, (OUT,), minval=-bound, maxval=bound,
                              dtype=jnp.float32)
    gamma = jnp.ones((OUT,), jnp.float32) + 0.01 * jax.random.normal(kg, (OUT,))
    beta = 0.01 * jax.random.normal(kbe, (OUT,))

    ref = dense_block_reference(x, weight, bias, gamma, beta)

    # f32 MXU path: tight tolerance against the reference.
    out_f32 = jax.block_until_ready(
        dense_block_forward(x, weight, bias, gamma, beta))
    assert out_f32.shape == (B, T, OUT)
    assert jnp.allclose(out_f32, ref, atol=1e-4, rtol=1e-4)

    # bf16 MXU path (v6e/v7x fast path): f32 stats/normalize, looser tolerance.
    out_bf16 = jax.block_until_ready(
        dense_block_forward(x, weight, bias, gamma, beta,
                            compute_dtype=jnp.bfloat16))
    assert out_bf16.shape == (B, T, OUT)
    assert jnp.allclose(out_bf16, ref, atol=5e-2, rtol=5e-2)

    print("KERNEL_OK")
</pallas_src>

<mosaic_0001>
module attributes {stable_mosaic.version = 11 : i64} {
  func.func @_matmul_stats_kernel(%arg0: i32, %arg1: i32, %arg2: memref<16x128xf32, #tpu.memory_space<vmem>>, %arg3: memref<128x128xf32, #tpu.memory_space<vmem>>, %arg4: memref<16x128xf32, #tpu.memory_space<vmem>>, %arg5: memref<1x128xf32, #tpu.memory_space<vmem>>, %arg6: memref<1x128xf32, #tpu.memory_space<vmem>>) attributes {dimension_semantics = [#tpu.dimension_semantics<parallel>, #tpu.dimension_semantics<arbitrary>], iteration_bounds = array<i64: 1, 1>, scalar_prefetch = 0 : i64, scratch_operands = 0 : i64, tpu.core_type = #tpu.core_type<tc>, window_params = [{transform_indices = @transform_0, window_bounds = array<i64: 16, 128>}, {transform_indices = @transform_1, window_bounds = array<i64: 128, 128>}, {transform_indices = @transform_2, window_bounds = array<i64: 16, 128>}, {transform_indices = @transform_3, window_bounds = array<i64: 1, 128>}, {transform_indices = @transform_4, window_bounds = array<i64: 1, 128>}]} {
    %c0 = arith.constant 0 : index
    %c0_0 = arith.constant 0 : index
    %0 = vector.load %arg2[%c0, %c0_0] : memref<16x128xf32, #tpu.memory_space<vmem>>, vector<16x128xf32>
    %c0_1 = arith.constant 0 : index
    %c0_2 = arith.constant 0 : index
    %1 = vector.load %arg3[%c0_1, %c0_2] : memref<128x128xf32, #tpu.memory_space<vmem>>, vector<128x128xf32>
    %cst = arith.constant dense<0.000000e+00> : vector<16x128xf32>
    %2 = tpu.matmul %0, %1, %cst {dimension_numbers = #tpu.dot_dimension_numbers<[1], [0], [0], [1], [0, 0, 1, 1], [], []>} : vector<16x128xf32>, vector<128x128xf32>, vector<16x128xf32> -> vector<16x128xf32>
    %c0_3 = arith.constant 0 : index
    %c0_4 = arith.constant 0 : index
    %3 = vector.load %arg4[%c0_3, %c0_4] : memref<16x128xf32, #tpu.memory_space<vmem>>, vector<16x128xf32>
    tpu.vector_store %arg4[%c0_3, %c0_4], %2 {strides = array<i32>} : memref<16x128xf32, #tpu.memory_space<vmem>>, vector<16x128xf32>,
    %c0_i32 = arith.constant 0 : i32
    %4 = arith.cmpi eq, %arg1, %c0_i32 : i32
    %5 = arith.extui %4 : i1 to i32
    %c0_i32_5 = arith.constant 0 : i32
    %6 = arith.cmpi ne, %5, %c0_i32_5 : i32
    scf.if %6 {
      %cst_16 = arith.constant 0.000000e+00 : f32
      %18 = vector.broadcast %cst_16 : f32 to vector<1x128xf32>
      %c0_17 = arith.constant 0 : index
      %c0_18 = arith.constant 0 : index
      %19 = vector.load %arg5[%c0_17, %c0_18] : memref<1x128xf32, #tpu.memory_space<vmem>>, vector<1x128xf32>
      tpu.vector_store %arg5[%c0_17, %c0_18], %18 {strides = array<i32>} : memref<1x128xf32, #tpu.memory_space<vmem>>, vector<1x128xf32>,
      %cst_19 = arith.constant 0.000000e+00 : f32
      %20 = vector.broadcast %cst_19 : f32 to vector<1x128xf32>
      %c0_20 = arith.constant 0 : index
      %c0_21 = arith.constant 0 : index
      %21 = vector.load %arg6[%c0_20, %c0_21] : memref<1x128xf32, #tpu.memory_space<vmem>>, vector<1x128xf32>
      tpu.vector_store %arg6[%c0_20, %c0_21], %20 {strides = array<i32>} : memref<1x128xf32, #tpu.memory_space<vmem>>, vector<1x128xf32>,
    } else {
    }
    %c0_6 = arith.constant 0 : index
    %c0_7 = arith.constant 0 : index
    %7 = vector.load %arg5[%c0_6, %c0_7] : memref<1x128xf32, #tpu.memory_space<vmem>>, vector<1x128xf32>
    %cst_8 = arith.constant dense<0.000000e+00> : vector<128xf32>
    %8 = vector.multi_reduction <add>, %2, %cst_8 [0] : vector<16x128xf32> to vector<128xf32>
    %9 = vector.shape_cast %8 : vector<128xf32> to vector<1x128xf32>
    %10 = arith.addf %7, %9 : vector<1x128xf32>
    %c0_9 = arith.constant 0 : index
    %c0_10 = arith.constant 0 : index
    %11 = vector.load %arg5[%c0_9, %c0_10] : memref<1x128xf32, #tpu.memory_space<vmem>>, vector<1x128xf32>
    tpu.vector_store %arg5[%c0_9, %c0_10], %10 {strides = array<i32>} : memref<1x128xf32, #tpu.memory_space<vmem>>, vector<1x128xf32>,
    %c0_11 = arith.constant 0 : index
    %c0_12 = arith.constant 0 : index
    %12 = vector.load %arg6[%c0_11, %c0_12] : memref<1x128xf32, #tpu.memory_space<vmem>>, vector<1x128xf32>
    %13 = arith.mulf %2, %2 : vector<16x128xf32>
    %cst_13 = arith.constant dense<0.000000e+00> : vector<128xf32>
    %14 = vector.multi_reduction <add>, %13, %cst_13 [0] : vector<16x128xf32> to vector<128xf32>
    %15 = vector.shape_cast %14 : vector<128xf32> to vector<1x128xf32>
    %16 = arith.addf %12, %15 : vector<1x128xf32>
    %c0_14 = arith.constant 0 : index
    %c0_15 = arith.constant 0 : index
    %17 = vector.load %arg6[%c0_14, %c0_15] : memref<1x128xf32, #tpu.memory_space<vmem>>, vector<1x128xf32>
    tpu.vector_store %arg6[%c0_14, %c0_15], %16 {strides = array<i32>} : memref<1x128xf32, #tpu.memory_space<vmem>>, vector<1x128xf32>,
    return
  }
  func.func @transform_0(%arg0: i32, %arg1: i32) -> (i32, i32) {
    %c0_i32 = arith.constant 0 : i32
    %c0_i32_0 = arith.constant 0 : i32
    return %arg1, %c0_i32 : i32, i32
  }
  func.func @transform_1(%arg0: i32, %arg1: i32) -> (i32, i32) {
    %c0_i32 = arith.constant 0 : i32
    %c0_i32_0 = arith.constant 0 : i32
    return %c0_i32, %arg0 : i32, i32
  }
  func.func @transform_2(%arg0: i32, %arg1: i32) -> (i32, i32) {
    %c0_i32 = arith.constant 0 : i32
    return %arg1, %arg0 : i32, i32
  }
  func.func @transform_3(%arg0: i32, %arg1: i32) -> (i32, i32) {
    %c0_i32 = arith.constant 0 : i32
    %c0_i32_0 = arith.constant 0 : i32
    return %c0_i32, %arg0 : i32, i32
  }
  func.func @transform_4(%arg0: i32, %arg1: i32) -> (i32, i32) {
    %c0_i32 = arith.constant 0 : i32
    %c0_i32_0 = arith.constant 0 : i32
    return %c0_i32, %arg0 : i32, i32
  }
}

</mosaic_0001>

<llo_original>
// kernel: tpu_custom_call.1
$region0: #{tpu_custom_call.1}
  #allocation0 [shape = 'u32[]', space=smem, size = 0x4, offset = 0x4, fixed_abs, tag = 'smem constant byte address 0x4 - core index']
  #allocation1 [shape = 'u32[144,128]{1,0:T(1,128)}', space=vmem, size = 0x12000, scoped, tag = 'internal scratch']
  %s0 = inlined_call_operand.hbm [shape: f32[16,128], index: 0, kind: input, shape index: {}]
  %s1 = inlined_call_operand.hbm [shape: f32[128,128], index: 1, kind: input, shape index: {}]
  %s2 = inlined_call_operand.hbm [shape: f32[16,128], index: 2, kind: output, shape index: {0}]
  %s3 = inlined_call_operand.hbm [shape: f32[1,128], index: 3, kind: output, shape index: {1}]
  %s4 = inlined_call_operand.hbm [shape: f32[1,128], index: 4, kind: output, shape index: {2}]
  %5 = xla_tuple %s2, %s3, %s4
  %s6 = sld [smem:[#allocation0]]
  $region46: #{tpu_custom_call.1} parent=0
    _
  %s8 = ssub.s32 1, %s6
  %s9 = scalar_select 0, %s8, %s6
  $region1: #{tpu_custom_call.1} parent=0
    #allocation2 [shape = 'u8[8192]{0}', space=vmem, size = 0x2000, scoped, tag = 'input window, operand 0, single buffered']
    #allocation3 [shape = 's32[1]{0}', space=sflag, size = 0x4, scoped, tag = 'scoped memory for tpu_custom_call.1']
    #allocation4 [shape = 's32[1]{0}', space=sflag, size = 0x4, scoped, tag = 'scoped memory for tpu_custom_call.1']
    #allocation5 [shape = 'u8[65536]{0}', space=vmem, size = 0x10000, scoped, tag = 'input window, operand 1, single buffered']
    #allocation6 [shape = 's32[1]{0}', space=sflag, size = 0x4, scoped, tag = 'scoped memory for tpu_custom_call.1']
    #allocation7 [shape = 'u8[8192]{0}', space=vmem, size = 0x2000, scoped, tag = 'output window, operand 0, single buffered']
    #allocation8 [shape = 'u8[512]{0}', space=vmem, size = 0x400, scoped, tag = 'output window, operand 1, single buffered']
    #allocation9 [shape = 's32[1]{0}', space=sflag, size = 0x4, scoped, tag = 'scoped memory for tpu_custom_call.1']
    #allocation10 [shape = 'u8[512]{0}', space=vmem, size = 0x400, scoped, tag = 'output window, operand 2, single buffered']
    %10 = vsyncpa [#allocation3], 0
    %11 = vsyncpa [#allocation6], 0
    %12 = vsyncpa [#allocation4], 0
    %13 = vsyncpa [#allocation9], 0
    // Predicated region
    $region2: #{tpu_custom_call.1} parent=1 // pred_check
      _
    $region3: #{tpu_custom_call.1} parent=1 // pred_check_branch
      %15 = sbr.rel (0) target = $region5
    $region4: #{tpu_custom_call.1} parent=1 // pred_region
      %s17 = ssub.s32 256, 256
      %18 = vsyncadd [#allocation3], %s17
      %s19 = sshll.u32 [#allocation2], 4
      %s20 = int_to_ptr.vmem [resolvable:$true] %s19
      %25 = dma.hbm_to_vmem [thread:$0]  %s0, 256, %s20, [#allocation3], 128, 128, 8
    $region5: #{tpu_custom_call.1} parent=1 // pred_fallthru
      _
    // Predicated region
    $region6: #{tpu_custom_call.1} parent=1 // pred_check
      _
    $region7: #{tpu_custom_call.1} parent=1 // pred_check_branch
      %27 = sbr.rel (0) target = $region9
    $region8: #{tpu_custom_call.1} parent=1 // pred_region
      %s29 = ssub.s32 2048, 2048
      %30 = vsyncadd [#allocation6], %s29
      %s31 = sshll.u32 [#allocation5], 4
      %s32 = int_to_ptr.vmem [resolvable:$true] %s31
      %37 = dma.hbm_to_vmem [thread:$0]  %s1, 2048, %s32, [#allocation6], 128, 128, 8
    $region9: #{tpu_custom_call.1} parent=1 // pred_fallthru
      _
    // Predicated region
    $region10: #{tpu_custom_call.1} parent=1 // pred_check
      _
    $region11: #{tpu_custom_call.1} parent=1 // pred_check_branch
      %39 = sbr.rel (0) target = $region13
    $region12: #{tpu_custom_call.1} parent=1 // pred_region
      %40 = dma.done [#allocation3], 256
    $region13: #{tpu_custom_call.1} parent=1 // pred_fallthru
      _
    // Predicated region
    $region14: #{tpu_custom_call.1} parent=1 // pred_check
      _
    $region15: #{tpu_custom_call.1} parent=1 // pred_check_branch
      %42 = sbr.rel (0) target = $region17
    $region16: #{tpu_custom_call.1} parent=1 // pred_region
      %43 = dma.done [#allocation6], 2048
    $region17: #{tpu_custom_call.1} parent=1 // pred_fallthru
      _
    %v44 = vld [vmem:[#allocation2] sm:$0xff]
    %v45 = vld [vmem:[#allocation2 + $0x8] sm:$0xff]
    %v46 = vld [vmem:[#allocation5] sm:$0xff]
    %v47 = vld [vmem:[#allocation5 + $0x8] sm:$0xff]
    %v48 = vld [vmem:[#allocation5 + $0x10] sm:$0xff]
    %v49 = vld [vmem:[#allocation5 + $0x18] sm:$0xff]
    %v50 = vld [vmem:[#allocation5 + $0x20] sm:$0xff]
    %v51 = vld [vmem:[#allocation5 + $0x28] sm:$0xff]
    %v52 = vld [vmem:[#allocation5 + $0x30] sm:$0xff]
    %v53 = vld [vmem:[#allocation5 + $0x38] sm:$0xff]
    %v54 = vld [vmem:[#allocation5 + $0x40] sm:$0xff]
    %v55 = vld [vmem:[#allocation5 + $0x48] sm:$0xff]
    %v56 = vld [vmem:[#allocation5 + $0x50] sm:$0xff]
    %v57 = vld [vmem:[#allocation5 + $0x58] sm:$0xff]
    %v58 = vld [vmem:[#allocation5 + $0x60] sm:$0xff]
    %v59 = vld [vmem:[#allocation5 + $0x68] sm:$0xff]
    %v60 = vld [vmem:[#allocation5 + $0x70] sm:$0xff]
    %v61 = vld [vmem:[#allocation5 + $0x78] sm:$0xff]
    %62 = vmatprep.subr.mxu0 0.0
    %63 = vmatpush1.msra.mxu0 %v46
    %64 = vmatprep.subr.mxu0 0.0
    %65 = vmatpush1.msra.mxu0 %v47
    %66 = vmatprep.subr.mxu0 0.0
    %67 = vmatpush1.msra.mxu0 %v48
    %68 = vmatprep.subr.mxu0 0.0
    %69 = vmatpush1.msra.mxu0 %v49
    %70 = vmatprep.subr.mxu0 0.0
    %71 = vmatpush1.msra.mxu0 %v50
    %72 = vmatprep.subr.mxu0 0.0
    %73 = vmatpush1.msra.mxu0 %v51
    %74 = vmatprep.subr.mxu0 0.0
    %75 = vmatpush1.msra.mxu0 %v52
    %76 = vmatprep.subr.mxu0 0.0
    %77 = vmatpush1.msra.mxu0 %v53
    %78 = vmatprep.subr.mxu0 0.0
    %79 = vmatpush1.msra.mxu0 %v54
    %80 = vmatprep.subr.mxu0 0.0
    %81 = vmatpush1.msra.mxu0 %v55
    %82 = vmatprep.subr.mxu0 0.0
    %83 = vmatpush1.msra.mxu0 %v56
    %84 = vmatprep.subr.mxu0 0.0
    %85 = vmatpush1.msra.mxu0 %v57
    %86 = vmatprep.subr.mxu0 0.0
    %87 = vmatpush1.msra.mxu0 %v58
    %88 = vmatprep.subr.mxu0 0.0
    %89 = vmatpush1.msra.mxu0 %v59
    %90 = vmatprep.subr.mxu0 0.0
    %91 = vmatpush1.msra.mxu0 %v60
    %92 = vmatprep.subr.mxu0 0.0
    %93 = vmatpush1.msra.mxu0 %v61
    %94 = vmatprep.subr.mxu0 0.0
    %95 = vmatpush1.msra.mxu0 0.0
    %96 = vmatprep.subr.mxu0 0.0
    %97 = vmatpush1.msra.mxu0 0.0
    %98 = vmatprep.subr.mxu0 0.0
    %99 = vmatpush1.msra.mxu0 0.0
    %100 = vmatprep.subr.mxu0 0.0
    %101 = vmatpush1.msra.mxu0 0.0
    %102 = vmatprep.subr.mxu0 0.0
    %103 = vmatpush1.msra.mxu0 0.0
    %104 = vmatprep.subr.mxu0 0.0
    %105 = vmatpush1.msra.mxu0 0.0
    %106 = vmatprep.subr.mxu0 0.0
    %107 = vmatpush1.msra.mxu0 0.0
    %108 = vmatprep.subr.mxu0 0.0
    %109 = vmatpush1.msra.mxu0 0.0
    %110 = vmatprep.subr.mxu0 0.0
    %111 = vmatpush1.msra.mxu0 0.0
    %112 = vmatprep.subr.mxu0 0.0
    %113 = vmatpush1.msra.mxu0 0.0
    %114 = vmatprep.subr.mxu0 0.0
    %115 = vmatpush1.msra.mxu0 0.0
    %116 = vmatprep.subr.mxu0 0.0
    %117 = vmatpush1.msra.mxu0 0.0
    %118 = vmatprep.subr.mxu0 0.0
    %119 = vmatpush1.msra.mxu0 0.0
    %120 = vmatprep.subr.mxu0 0.0
    %121 = vmatpush1.msra.mxu0 0.0
    %122 = vmatprep.subr.mxu0 0.0
    %123 = vmatpush1.msra.mxu0 0.0
    %124 = vmatprep.subr.mxu0 0.0
    %125 = vmatpush1.msra.mxu0 0.0
    %126 = vmatprep.mubr.f32.mxu0 0.0
    %127 = vmatmul.mubr.f32.gmra.mrb[0].mxu0 %v44
    %v128 = vpop.f32.mrb[0].mxu0
    %v129 = vadd.f32 0.0, %v128
    %v130 = vpop.f32.mrb[0].mxu0
    %131 = vmatprep.mubr.f32.mxu0 0.0
    %132 = vmatmul.mubr.f32.gmra.mrb[0].mxu0 %v45
    %v133 = vpop.f32.mrb[0].mxu0
    %v134 = vadd.f32 0.0, %v133
    %v135 = vpop.f32.mrb[0].mxu0
    %136 = vdwg.mxu0
    %137 = vst [vmem:[#allocation7] sm:$0xff] %v129
    %138 = vst [vmem:[#allocation7 + $0x8] sm:$0xff] %v134
    %p139 = scmp.eq.s32.totalorder 0, 0
    // Predicated region
    $region18: #{tpu_custom_call.1} parent=1 // pred_check
      %p140 = pneg %p139
    $region19: #{tpu_custom_call.1} parent=1 // pred_check_branch
      %142 = sbr.rel (%p140) target = $region21
    $region20: #{tpu_custom_call.1} parent=1 // pred_region
      %143 = vst [vmem:[#allocation8] sm:$0x1] 0.0
      %144 = vst [vmem:[#allocation10] sm:$0x1] 0.0
    $region21: #{tpu_custom_call.1} parent=1 // pred_fallthru
      _
    %v145 = vld [vmem:[#allocation8] sm:$0x1]
    %v146 = vadd.f32 %v129, %v134
    %v147 = vrot.slane %v146, 4
    %v148 = vadd.f32 %v146, %v147
    %v149 = vrot.slane %v148, 2
    %v150 = vadd.f32 %v148, %v149
    %v151 = vrot.slane %v150, 1
    %v152 = vadd.f32 %v150, %v151
    %v153 = vadd.f32 %v145, %v152
    %154 = vst [vmem:[#allocation8] sm:$0x1] %v153
    %v155 = vld [vmem:[#allocation10] sm:$0x1]
    %v156 = vmul.f32 %v129, %v129
    %v157 = vmul.f32 %v134, %v134
    %v158 = vadd.f32 %v156, %v157
    %v159 = vrot.slane %v158, 4
    %v160 = vadd.f32 %v158, %v159
    %v161 = vrot.slane %v160, 2
    %v162 = vadd.f32 %v160, %v161
    %v163 = vrot.slane %v162, 1
    %v164 = vadd.f32 %v162, %v163
    %v165 = vadd.f32 %v155, %v164
    %166 = vst [vmem:[#allocation10] sm:$0x1] %v165
    // Predicated region
    $region22: #{tpu_custom_call.1} parent=1 // pred_check
      _
    $region23: #{tpu_custom_call.1} parent=1 // pred_check_branch
      %168 = sbr.rel (0) target = $region25
    $region24: #{tpu_custom_call.1} parent=1 // pred_region
      %s170 = ssub.s32 256, 256
      %171 = vsyncadd [#allocation4], %s170
      %s172 = sshll.u32 [#allocation7], 4
      %s173 = int_to_ptr.vmem [resolvable:$true] %s172
      %178 = dma.vmem_to_hbm [thread:$0]  %s173, 256, %s2, [#allocation4], 128, 128, 8
    $region25: #{tpu_custom_call.1} parent=1 // pred_fallthru
      _
    // Predicated region
    $region26: #{tpu_custom_call.1} parent=1 // pred_check
      _
    $region27: #{tpu_custom_call.1} parent=1 // pred_check_branch
      %180 = sbr.rel (0) target = $region29
    $region28: #{tpu_custom_call.1} parent=1 // pred_region
      %s182 = ssub.s32 16, 16
      %183 = vsyncadd [#allocation9], %s182
      %s185 = sshll.u32 [#allocation8], 4
      %s186 = int_to_ptr.vmem [resolvable:$true] %s185
      %188 = dma.vmem_to_hbm [thread:$0]  %s186, 16, %s3, [#allocation9]
    $region29: #{tpu_custom_call.1} parent=1 // pred_fallthru
      _
    // Predicated region
    $region30: #{tpu_custom_call.1} parent=1 // pred_check
      _
    $region31: #{tpu_custom_call.1} parent=1 // pred_check_branch
      %190 = sbr.rel (0) target = $region33
    $region32: #{tpu_custom_call.1} parent=1 // pred_region
      %s192 = ssub.s32 16, 16
      %193 = vsyncadd [#allocation9], %s192
      %s195 = sshll.u32 [#allocation10], 4
      %s196 = int_to_ptr.vmem [resolvable:$true] %s195
      %198 = dma.vmem_to_hbm [thread:$0]  %s196, 16, %s4, [#allocation9]
    $region33: #{tpu_custom_call.1} parent=1 // pred_fallthru
      _
    // Predicated region
    $region34: #{tpu_custom_call.1} parent=1 // pred_check
      _
    $region35: #{tpu_custom_call.1} parent=1 // pred_check_branch
      %200 = sbr.rel (0) target = $region37
    $region36: #{tpu_custom_call.1} parent=1 // pred_region
      %201 = dma.done [#allocation4], 256
    $region37: #{tpu_custom_call.1} parent=1 // pred_fallthru
      _
    // Predicated region
    $region38: #{tpu_custom_call.1} parent=1 // pred_check
      _
    $region39: #{tpu_custom_call.1} parent=1 // pred_check_branch
      %203 = sbr.rel (0) target = $region41
    $region40: #{tpu_custom_call.1} parent=1 // pred_region
      %204 = dma.done [#allocation9], 16
    $region41: #{tpu_custom_call.1} parent=1 // pred_fallthru
      _
    // Predicated region
    $region42: #{tpu_custom_call.1} parent=1 // pred_check
      _
    $region43: #{tpu_custom_call.1} parent=1 // pred_check_branch
      %206 = sbr.rel (0) target = $region45
    $region44: #{tpu_custom_call.1} parent=1 // pred_region
      %207 = dma.done [#allocation9], 16
    $region45: #{tpu_custom_call.1} parent=1 // pred_fallthru
      _
    %208 = vsyncpa [#allocation3], 1
    %209 = vsyncpa [#allocation6], 1
    %210 = vsyncpa [#allocation4], 1
    %211 = vsyncpa [#allocation9], 1

</llo_original>
